<compile_context>
chip_gen: v7x
topology: tpu7x:2x2x1
jax: 0.10.0
libtpu: 0.0.40
codegen_flags: <defaults>
</compile_context>

<pallas_src>
import functools

import jax
import jax.numpy as jnp
from jax.experimental import pallas as pl
from jax.experimental.pallas import tpu as pltpu


def _tv_kernel(x_ref, out_h_ref, out_w_ref, hacc_ref, wacc_ref, prev_ref, *, nh):
    j = pl.program_id(1)

    # Reset the per-BC-tile accumulators at the first H chunk.
    @pl.when(j == 0)
    def _():
        hacc_ref[...] = jnp.zeros_like(hacc_ref)
        wacc_ref[...] = jnp.zeros_like(wacc_ref)

    # Single up-cast per loaded block; accumulate in f32.
    x = x_ref[...].astype(jnp.float32)            # (TBC, TH, W)
    _, th, w = x.shape

    if th > 1:
        dh = x[:, 1:, :] - x[:, : th - 1, :]      # (TBC, TH-1, W)
        hacc_ref[...] += jnp.sum(dh * dh)
    if w > 1:
        dw = x[:, :, 1:] - x[:, :, : w - 1]       # (TBC, TH, W-1)
        wacc_ref[...] += jnp.sum(dw * dw)

    if nh > 1:
        # Cross-chunk H difference: first row of this chunk vs. the carried
        # last row of the previous chunk (same BC tile, previous j).
        @pl.when(j > 0)
        def _():
            d = x[:, 0:1, :] - prev_ref[...]      # (TBC, 1, W)
            hacc_ref[...] += jnp.sum(d * d)

        prev_ref[...] = x[:, th - 1 : th, :]

    # Lane-dense (8,128) stores, exactly once per BC tile.
    @pl.when(j == nh - 1)
    def _():
        out_h_ref[...] = hacc_ref[...]
        out_w_ref[...] = wacc_ref[...]


def _choose_tiles(bc, h, w, itemsize, budget_bytes=2 * 1024 * 1024):
    """Pick (TBC, TH): blocks of a few MiB at most that evenly divide the array."""
    slice_bytes = h * w * itemsize
    if slice_bytes <= budget_bytes:
        # Whole (H, W) slices; pack as many batch*channel slices per block as fit.
        tbc = int(min(bc, max(1, budget_bytes // slice_bytes)))
        while bc % tbc:
            tbc -= 1
        return tbc, h
    # One (H, W) slice is too big: tile H.  When TH != H the block's
    # second-to-last dim must be a multiple of 8.
    th = None
    cand = 8
    while cand < h:
        if h % cand == 0 and cand * w * itemsize <= budget_bytes:
            th = cand
        cand += 8
    if th is None:
        th = h  # no aligned divisor fits; fall back to the full slice
    return 1, th


def tv_loss(x, tv_loss_weight=1.0):
    """Total variation loss, matching the PyTorch TVLoss.forward semantics."""
    b, c, h, w = x.shape
    bc = b * c
    x2 = x.reshape(bc, h, w)

    tbc, th = _choose_tiles(bc, h, w, x.dtype.itemsize)
    nbc = bc // tbc
    nh = h // th

    out_struct = jax.ShapeDtypeStruct((nbc, 8, 128), jnp.float32)

    sums_h, sums_w = pl.pallas_call(
        functools.partial(_tv_kernel, nh=nh),
        out_shape=(out_struct, out_struct),
        grid_spec=pltpu.PrefetchScalarGridSpec(
            num_scalar_prefetch=0,
            grid=(nbc, nh),
            in_specs=[
                pl.BlockSpec((tbc, th, w), lambda i, j: (i, j, 0)),
            ],
            out_specs=[
                pl.BlockSpec((1, 8, 128), lambda i, j: (i, 0, 0)),
                pl.BlockSpec((1, 8, 128), lambda i, j: (i, 0, 0)),
            ],
            scratch_shapes=[
                pltpu.VMEM((1, 8, 128), jnp.float32),   # running h_tv (broadcast)
                pltpu.VMEM((1, 8, 128), jnp.float32),   # running w_tv (broadcast)
                pltpu.VMEM((tbc, 1, w), jnp.float32),   # carried last row of a chunk
            ],
        ),
        compiler_params=pltpu.CompilerParams(
            dimension_semantics=("parallel", "arbitrary"),
            vmem_limit_bytes=48 * 1024 * 1024,
        ),
    )(x2)

    h_tv = jnp.sum(sums_h[:, 0, 0])
    w_tv = jnp.sum(sums_w[:, 0, 0])

    count_h = c * (h - 1) * w
    count_w = c * h * (w - 1)
    # NOTE: h == 1 or w == 1 divides by zero, exactly like the PyTorch module.
    return tv_loss_weight * 2.0 * (h_tv / count_h + w_tv / count_w) / b


def _tv_loss_ref(x, tv_loss_weight=1.0):
    """Pure-JAX reference for correctness checking."""
    b, c, h, w = x.shape
    count_h = c * (h - 1) * w
    count_w = c * h * (w - 1)
    h_tv = jnp.sum((x[:, :, 1:, :] - x[:, :, : h - 1, :]) ** 2)
    w_tv = jnp.sum((x[:, :, :, 1:] - x[:, :, :, : w - 1]) ** 2)
    return tv_loss_weight * 2.0 * (h_tv / count_h + w_tv / count_w) / b


if __name__ == "__main__":
    key = jax.random.PRNGKey(0)
    x = jax.random.normal(key, (2, 4, 16, 16), dtype=jnp.float32)

    out = tv_loss(x, tv_loss_weight=1.0)
    out = jax.block_until_ready(out)

    ref = _tv_loss_ref(x, tv_loss_weight=1.0)
    assert jnp.allclose(out, ref, rtol=1e-5, atol=1e-5), (out, ref)

    print("KERNEL_OK")
</pallas_src>

<mosaic_0001>
module attributes {stable_mosaic.version = 11 : i64} {
  func.func @_tv_kernel(%arg0: i32, %arg1: i32, %arg2: memref<8x16x16xf32, #tpu.memory_space<vmem>>, %arg3: memref<1x8x128xf32, #tpu.memory_space<vmem>>, %arg4: memref<1x8x128xf32, #tpu.memory_space<vmem>>, %arg5: memref<1x8x128xf32, #tpu.memory_space<vmem>>, %arg6: memref<1x8x128xf32, #tpu.memory_space<vmem>>, %arg7: memref<8x1x16xf32, #tpu.memory_space<vmem>>) attributes {dimension_semantics = [#tpu.dimension_semantics<parallel>, #tpu.dimension_semantics<arbitrary>], iteration_bounds = array<i64: 1, 1>, scalar_prefetch = 0 : i64, scratch_operands = 3 : i64, tpu.core_type = #tpu.core_type<tc>, window_params = [{transform_indices = @transform_0, window_bounds = array<i64: 8, 16, 16>}, {transform_indices = @transform_1, window_bounds = array<i64: 1, 8, 128>}, {transform_indices = @transform_2, window_bounds = array<i64: 1, 8, 128>}]} {
    %c0_i32 = arith.constant 0 : i32
    %0 = arith.cmpi eq, %arg1, %c0_i32 : i32
    %1 = arith.extui %0 : i1 to i32
    %c0_i32_0 = arith.constant 0 : i32
    %2 = arith.cmpi ne, %1, %c0_i32_0 : i32
    scf.if %2 {
      %cst_18 = arith.constant 0.000000e+00 : f32
      %31 = vector.broadcast %cst_18 : f32 to vector<1x8x128xf32>
      %c0_19 = arith.constant 0 : index
      %c0_20 = arith.constant 0 : index
      %c0_21 = arith.constant 0 : index
      %32 = vector.load %arg5[%c0_19, %c0_20, %c0_21] : memref<1x8x128xf32, #tpu.memory_space<vmem>>, vector<1x8x128xf32>
      tpu.vector_store %arg5[%c0_19, %c0_20, %c0_21], %31 {strides = array<i32>} : memref<1x8x128xf32, #tpu.memory_space<vmem>>, vector<1x8x128xf32>,
      %cst_22 = arith.constant 0.000000e+00 : f32
      %33 = vector.broadcast %cst_22 : f32 to vector<1x8x128xf32>
      %c0_23 = arith.constant 0 : index
      %c0_24 = arith.constant 0 : index
      %c0_25 = arith.constant 0 : index
      %34 = vector.load %arg6[%c0_23, %c0_24, %c0_25] : memref<1x8x128xf32, #tpu.memory_space<vmem>>, vector<1x8x128xf32>
      tpu.vector_store %arg6[%c0_23, %c0_24, %c0_25], %33 {strides = array<i32>} : memref<1x8x128xf32, #tpu.memory_space<vmem>>, vector<1x8x128xf32>,
    } else {
    }
    %c0 = arith.constant 0 : index
    %c0_1 = arith.constant 0 : index
    %c0_2 = arith.constant 0 : index
    %3 = vector.load %arg2[%c0, %c0_1, %c0_2] : memref<8x16x16xf32, #tpu.memory_space<vmem>>, vector<8x16x16xf32>
    %4 = vector.extract_strided_slice %3 {offsets = [0, 1, 0], sizes = [8, 15, 16], strides = [1, 1, 1]} : vector<8x16x16xf32> to vector<8x15x16xf32>
    %5 = vector.extract_strided_slice %3 {offsets = [0, 0, 0], sizes = [8, 15, 16], strides = [1, 1, 1]} : vector<8x16x16xf32> to vector<8x15x16xf32>
    %6 = arith.subf %4, %5 : vector<8x15x16xf32>
    %c0_3 = arith.constant 0 : index
    %c0_4 = arith.constant 0 : index
    %c0_5 = arith.constant 0 : index
    %7 = vector.load %arg5[%c0_3, %c0_4, %c0_5] : memref<1x8x128xf32, #tpu.memory_space<vmem>>, vector<1x8x128xf32>
    %8 = arith.mulf %6, %6 : vector<8x15x16xf32>
    %9 = vector.shape_cast %8 : vector<8x15x16xf32> to vector<1x8x15x16xf32>
    %cst = arith.constant dense<0.000000e+00> : vector<1xf32>
    %10 = vector.multi_reduction <add>, %9, %cst [1, 2, 3] : vector<1x8x15x16xf32> to vector<1xf32>
    %11 = vector.shape_cast %10 : vector<1xf32> to vector<1x1x1x1xf32>
    %12 = vector.extract %11[0, 0, 0, 0] : f32 from vector<1x1x1x1xf32>
    %13 = vector.broadcast %12 : f32 to vector<1x8x128xf32>
    %14 = arith.addf %7, %13 : vector<1x8x128xf32>
    %c0_6 = arith.constant 0 : index
    %c0_7 = arith.constant 0 : index
    %c0_8 = arith.constant 0 : index
    %15 = vector.load %arg5[%c0_6, %c0_7, %c0_8] : memref<1x8x128xf32, #tpu.memory_space<vmem>>, vector<1x8x128xf32>
    tpu.vector_store %arg5[%c0_6, %c0_7, %c0_8], %14 {strides = array<i32>} : memref<1x8x128xf32, #tpu.memory_space<vmem>>, vector<1x8x128xf32>,
    %16 = vector.extract_strided_slice %3 {offsets = [0, 0, 1], sizes = [8, 16, 15], strides = [1, 1, 1]} : vector<8x16x16xf32> to vector<8x16x15xf32>
    %17 = vector.extract_strided_slice %3 {offsets = [0, 0, 0], sizes = [8, 16, 15], strides = [1, 1, 1]} : vector<8x16x16xf32> to vector<8x16x15xf32>
    %18 = arith.subf %16, %17 : vector<8x16x15xf32>
    %c0_9 = arith.constant 0 : index
    %c0_10 = arith.constant 0 : index
    %c0_11 = arith.constant 0 : index
    %19 = vector.load %arg6[%c0_9, %c0_10, %c0_11] : memref<1x8x128xf32, #tpu.memory_space<vmem>>, vector<1x8x128xf32>
    %20 = arith.mulf %18, %18 : vector<8x16x15xf32>
    %21 = vector.shape_cast %20 : vector<8x16x15xf32> to vector<1x8x16x15xf32>
    %cst_12 = arith.constant dense<0.000000e+00> : vector<1xf32>
    %22 = vector.multi_reduction <add>, %21, %cst_12 [1, 2, 3] : vector<1x8x16x15xf32> to vector<1xf32>
    %23 = vector.shape_cast %22 : vector<1xf32> to vector<1x1x1x1xf32>
    %24 = vector.extract %23[0, 0, 0, 0] : f32 from vector<1x1x1x1xf32>
    %25 = vector.broadcast %24 : f32 to vector<1x8x128xf32>
    %26 = arith.addf %19, %25 : vector<1x8x128xf32>
    %c0_13 = arith.constant 0 : index
    %c0_14 = arith.constant 0 : index
    %c0_15 = arith.constant 0 : index
    %27 = vector.load %arg6[%c0_13, %c0_14, %c0_15] : memref<1x8x128xf32, #tpu.memory_space<vmem>>, vector<1x8x128xf32>
    tpu.vector_store %arg6[%c0_13, %c0_14, %c0_15], %26 {strides = array<i32>} : memref<1x8x128xf32, #tpu.memory_space<vmem>>, vector<1x8x128xf32>,
    %c0_i32_16 = arith.constant 0 : i32
    %28 = arith.cmpi eq, %arg1, %c0_i32_16 : i32
    %29 = arith.extui %28 : i1 to i32
    %c0_i32_17 = arith.constant 0 : i32
    %30 = arith.cmpi ne, %29, %c0_i32_17 : i32
    scf.if %30 {
      %c0_18 = arith.constant 0 : index
      %c0_19 = arith.constant 0 : index
      %c0_20 = arith.constant 0 : index
      %31 = vector.load %arg5[%c0_18, %c0_19, %c0_20] : memref<1x8x128xf32, #tpu.memory_space<vmem>>, vector<1x8x128xf32>
      %c0_21 = arith.constant 0 : index
      %c0_22 = arith.constant 0 : index
      %c0_23 = arith.constant 0 : index
      %32 = vector.load %arg3[%c0_21, %c0_22, %c0_23] : memref<1x8x128xf32, #tpu.memory_space<vmem>>, vector<1x8x128xf32>
      tpu.vector_store %arg3[%c0_21, %c0_22, %c0_23], %31 {strides = array<i32>} : memref<1x8x128xf32, #tpu.memory_space<vmem>>, vector<1x8x128xf32>,
      %c0_24 = arith.constant 0 : index
      %c0_25 = arith.constant 0 : index
      %c0_26 = arith.constant 0 : index
      %33 = vector.load %arg6[%c0_24, %c0_25, %c0_26] : memref<1x8x128xf32, #tpu.memory_space<vmem>>, vector<1x8x128xf32>
      %c0_27 = arith.constant 0 : index
      %c0_28 = arith.constant 0 : index
      %c0_29 = arith.constant 0 : index
      %34 = vector.load %arg4[%c0_27, %c0_28, %c0_29] : memref<1x8x128xf32, #tpu.memory_space<vmem>>, vector<1x8x128xf32>
      tpu.vector_store %arg4[%c0_27, %c0_28, %c0_29], %33 {strides = array<i32>} : memref<1x8x128xf32, #tpu.memory_space<vmem>>, vector<1x8x128xf32>,
    } else {
    }
    return
  }
  func.func @transform_0(%arg0: i32, %arg1: i32) -> (i32, i32, i32) {
    %c0_i32 = arith.constant 0 : i32
    %c0_i32_0 = arith.constant 0 : i32
    return %arg0, %arg1, %c0_i32 : i32, i32, i32
  }
  func.func @transform_1(%arg0: i32, %arg1: i32) -> (i32, i32, i32) {
    %c0_i32 = arith.constant 0 : i32
    %c0_i32_0 = arith.constant 0 : i32
    %c0_i32_1 = arith.constant 0 : i32
    return %arg0, %c0_i32, %c0_i32_0 : i32, i32, i32
  }
  func.func @transform_2(%arg0: i32, %arg1: i32) -> (i32, i32, i32) {
    %c0_i32 = arith.constant 0 : i32
    %c0_i32_0 = arith.constant 0 : i32
    %c0_i32_1 = arith.constant 0 : i32
    return %arg0, %c0_i32, %c0_i32_0 : i32, i32, i32
  }
}

</mosaic_0001>

<llo_original>
// kernel: tpu_custom_call.1
$region0: #{tpu_custom_call.1}
  #allocation0 [shape = 'u32[]', space=smem, size = 0x4, offset = 0x4, fixed_abs, tag = 'smem constant byte address 0x4 - core index']
  #allocation1 [shape = 'u32[144,128]{1,0:T(1,128)}', space=vmem, size = 0x12000, scoped, tag = 'internal scratch']
  #allocation2 [shape = 'f32[1,8,128]{2,1,0:T(8,128)}', space=vmem, size = 0x1000, scoped, tag = 'scratch operand']
  #allocation3 [shape = 'f32[1,8,128]{2,1,0:T(8,128)}', space=vmem, size = 0x1000, scoped, tag = 'scratch operand']
  #allocation4 [shape = 'f32[8,1,16]{2,1,0:T(1,128)}', space=vmem, size = 0x1000, scoped, tag = 'scratch operand']
  %s0 = inlined_call_operand.hbm [shape: f32[8,16,16], index: 0, kind: input, shape index: {}]
  %s1 = inlined_call_operand.hbm [shape: f32[1,8,128], index: 1, kind: output, shape index: {0}]
  %s2 = inlined_call_operand.hbm [shape: f32[1,8,128], index: 2, kind: output, shape index: {1}]
  %3 = xla_tuple %s1, %s2
  %s4 = sld [smem:[#allocation0]]
  $region34: #{tpu_custom_call.1} parent=0
    _
  %s6 = ssub.s32 1, %s4
  %s7 = scalar_select 0, %s6, %s4
  $region1: #{tpu_custom_call.1} parent=0
    #allocation5 [shape = 'u8[65536]{0}', space=vmem, size = 0x10000, scoped, tag = 'input window, operand 0, single buffered']
    #allocation6 [shape = 's32[1]{0}', space=sflag, size = 0x4, scoped, tag = 'scoped memory for tpu_custom_call.1']
    #allocation7 [shape = 's32[1]{0}', space=sflag, size = 0x4, scoped, tag = 'scoped memory for tpu_custom_call.1']
    #allocation8 [shape = 'u8[4096]{0}', space=vmem, size = 0x1000, scoped, tag = 'output window, operand 0, single buffered']
    #allocation9 [shape = 'u8[4096]{0}', space=vmem, size = 0x1000, scoped, tag = 'output window, operand 1, single buffered']
    #allocation10 [shape = 's32[1]{0}', space=sflag, size = 0x4, scoped, tag = 'scoped memory for tpu_custom_call.1']
    %8 = vsyncpa [#allocation6], 0
    %9 = vsyncpa [#allocation7], 0
    %10 = vsyncpa [#allocation10], 0
    // Predicated region
    $region2: #{tpu_custom_call.1} parent=1 // pred_check
      _
    $region3: #{tpu_custom_call.1} parent=1 // pred_check_branch
      %12 = sbr.rel (0) target = $region5
    $region4: #{tpu_custom_call.1} parent=1 // pred_region
      %s14 = ssub.s32 2048, 2048
      %15 = vsyncadd [#allocation6], %s14
      %s16 = sshll.u32 [#allocation5], 4
      %s17 = int_to_ptr.vmem [resolvable:$true] %s16
      %22 = dma.hbm_to_vmem [thread:$0]  %s0, 2048, %s17, [#allocation6], 128, 128, 8
    $region5: #{tpu_custom_call.1} parent=1 // pred_fallthru
      _
    // Predicated region
    $region6: #{tpu_custom_call.1} parent=1 // pred_check
      _
    $region7: #{tpu_custom_call.1} parent=1 // pred_check_branch
      %24 = sbr.rel (0) target = $region9
    $region8: #{tpu_custom_call.1} parent=1 // pred_region
      %25 = dma.done [#allocation6], 2048
    $region9: #{tpu_custom_call.1} parent=1 // pred_fallthru
      _
    %p26 = scmp.eq.s32.totalorder 0, 0
    // Predicated region
    $region10: #{tpu_custom_call.1} parent=1 // pred_check
      %p27 = pneg %p26
    $region11: #{tpu_custom_call.1} parent=1 // pred_check_branch
      %29 = sbr.rel (%p27) target = $region13
    $region12: #{tpu_custom_call.1} parent=1 // pred_region
      %30 = vst [vmem:[#allocation2] sm:$0xff] 0.0
      %31 = vst [vmem:[#allocation3] sm:$0xff] 0.0
    $region13: #{tpu_custom_call.1} parent=1 // pred_fallthru
      _
    %v32 = vld [vmem:[#allocation5] sm:$0xff]
    %v33 = vld [vmem:[#allocation5 + $0x8] sm:$0xff]
    %v34 = vld [vmem:[#allocation5 + $0x10] sm:$0xff]
    %v35 = vld [vmem:[#allocation5 + $0x18] sm:$0xff]
    %v36 = vld [vmem:[#allocation5 + $0x20] sm:$0xff]
    %v37 = vld [vmem:[#allocation5 + $0x28] sm:$0xff]
    %v38 = vld [vmem:[#allocation5 + $0x30] sm:$0xff]
    %v39 = vld [vmem:[#allocation5 + $0x38] sm:$0xff]
    %v40 = vld [vmem:[#allocation5 + $0x40] sm:$0xff]
    %v41 = vld [vmem:[#allocation5 + $0x48] sm:$0xff]
    %v42 = vld [vmem:[#allocation5 + $0x50] sm:$0xff]
    %v43 = vld [vmem:[#allocation5 + $0x58] sm:$0xff]
    %v44 = vld [vmem:[#allocation5 + $0x60] sm:$0xff]
    %v45 = vld [vmem:[#allocation5 + $0x68] sm:$0xff]
    %v46 = vld [vmem:[#allocation5 + $0x70] sm:$0xff]
    %v47 = vld [vmem:[#allocation5 + $0x78] sm:$0xff]
    %vm64 = vcmask 1040384
    %v65 = vrot.slane %v32, 7
    %v66 = vrot.slane %v33, 7
    %v67 = vsel %vm64, %v65, %v66
    %v68 = vrot.slane %v34, 7
    %v69 = vrot.slane %v35, 7
    %v70 = vsel %vm64, %v68, %v69
    %v71 = vrot.slane %v36, 7
    %v72 = vrot.slane %v37, 7
    %v73 = vsel %vm64, %v71, %v72
    %v74 = vrot.slane %v38, 7
    %v75 = vrot.slane %v39, 7
    %v76 = vsel %vm64, %v74, %v75
    %v77 = vrot.slane %v40, 7
    %v78 = vrot.slane %v41, 7
    %v79 = vsel %vm64, %v77, %v78
    %v80 = vrot.slane %v42, 7
    %v81 = vrot.slane %v43, 7
    %v82 = vsel %vm64, %v80, %v81
    %v83 = vrot.slane %v44, 7
    %v84 = vrot.slane %v45, 7
    %v85 = vsel %vm64, %v83, %v84
    %v86 = vrot.slane %v46, 7
    %v87 = vrot.slane %v47, 7
    %v88 = vsel %vm64, %v86, %v87
    %v105 = vsub.f32 %v32, %v65
    %v106 = vsub.f32 %v33, %v67
    %v107 = vsub.f32 %v34, %v68
    %v108 = vsub.f32 %v35, %v70
    %v109 = vsub.f32 %v36, %v71
    %v110 = vsub.f32 %v37, %v73
    %v111 = vsub.f32 %v38, %v74
    %v112 = vsub.f32 %v39, %v76
    %v113 = vsub.f32 %v40, %v77
    %v114 = vsub.f32 %v41, %v79
    %v115 = vsub.f32 %v42, %v80
    %v116 = vsub.f32 %v43, %v82
    %v117 = vsub.f32 %v44, %v83
    %v118 = vsub.f32 %v45, %v85
    %v119 = vsub.f32 %v46, %v86
    %v120 = vsub.f32 %v47, %v88
    %v121 = vld [vmem:[#allocation2] sm:$0xff]
    %v122 = vmul.f32 %v105, %v105
    %v123 = vmul.f32 %v106, %v106
    %v124 = vmul.f32 %v107, %v107
    %v125 = vmul.f32 %v108, %v108
    %v126 = vmul.f32 %v109, %v109
    %v127 = vmul.f32 %v110, %v110
    %v128 = vmul.f32 %v111, %v111
    %v129 = vmul.f32 %v112, %v112
    %v130 = vmul.f32 %v113, %v113
    %v131 = vmul.f32 %v114, %v114
    %v132 = vmul.f32 %v115, %v115
    %v133 = vmul.f32 %v116, %v116
    %v134 = vmul.f32 %v117, %v117
    %v135 = vmul.f32 %v118, %v118
    %v136 = vmul.f32 %v119, %v119
    %v137 = vmul.f32 %v120, %v120
    %vm154 = vcmask 1046528
    %v155 = vrot.slane %v122, 1
    %v156 = vrot.slane %v123, 1
    %v157 = vsel %vm154, %v155, %v156
    %v158 = vrot.slane %v124, 1
    %v159 = vrot.slane %v125, 1
    %v160 = vsel %vm154, %v158, %v159
    %v161 = vrot.slane %v126, 1
    %v162 = vrot.slane %v127, 1
    %v163 = vsel %vm154, %v161, %v162
    %v164 = vrot.slane %v128, 1
    %v165 = vrot.slane %v129, 1
    %v166 = vsel %vm154, %v164, %v165
    %v167 = vrot.slane %v130, 1
    %v168 = vrot.slane %v131, 1
    %v169 = vsel %vm154, %v167, %v168
    %v170 = vrot.slane %v132, 1
    %v171 = vrot.slane %v133, 1
    %v172 = vsel %vm154, %v170, %v171
    %v173 = vrot.slane %v134, 1
    %v174 = vrot.slane %v135, 1
    %v175 = vsel %vm154, %v173, %v174
    %v176 = vrot.slane %v136, 1
    %v177 = vrot.slane %v137, 1
    %v178 = vsel %vm154, %v176, %v177
    %vm195 = vcmask 130048
    %v196 = vsel %vm195, %v157, 0.0
    %vm197 = vcmask 129024
    %v198 = vsel %vm197, %v156, 0.0
    %v199 = vadd.f32 %v196, %v198
    %v200 = vsel %vm195, %v160, 0.0
    %v201 = vadd.f32 %v199, %v200
    %v202 = vsel %vm197, %v159, 0.0
    %v203 = vadd.f32 %v201, %v202
    %v204 = vsel %vm195, %v163, 0.0
    %v205 = vadd.f32 %v203, %v204
    %v206 = vsel %vm197, %v162, 0.0
    %v207 = vadd.f32 %v205, %v206
    %v208 = vsel %vm195, %v166, 0.0
    %v209 = vadd.f32 %v207, %v208
    %v210 = vsel %vm197, %v165, 0.0
    %v211 = vadd.f32 %v209, %v210
    %v212 = vsel %vm195, %v169, 0.0
    %v213 = vadd.f32 %v211, %v212
    %v214 = vsel %vm197, %v168, 0.0
    %v215 = vadd.f32 %v213, %v214
    %v216 = vsel %vm195, %v172, 0.0
    %v217 = vadd.f32 %v215, %v216
    %v218 = vsel %vm197, %v171, 0.0
    %v219 = vadd.f32 %v217, %v218
    %v220 = vsel %vm195, %v175, 0.0
    %v221 = vadd.f32 %v219, %v220
    %v222 = vsel %vm197, %v174, 0.0
    %v223 = vadd.f32 %v221, %v222
    %v224 = vsel %vm195, %v178, 0.0
    %v225 = vadd.f32 %v223, %v224
    %v226 = vsel %vm197, %v177, 0.0
    %v227 = vadd.f32 %v225, %v226
    %228 = vadd.xlane.f32.xlu0 %v227
    %v229 = vpop.xlane.xlu0 %228
    %v230 = vrot.slane %v229, 4
    %v231 = vadd.f32 %v229, %v230
    %v232 = vrot.slane %v231, 2
    %v233 = vadd.f32 %v231, %v232
    %v234 = vrot.slane %v233, 1
    %v235 = vadd.f32 %v233, %v234
    %s236 = vtos %v235
    %v237 = vstv %s236
    %v238 = vadd.f32 %v121, %v237
    %239 = vst [vmem:[#allocation2] sm:$0xff] %v238
    %240 = vrot.lane.b32.xlu0 %v32, 1
    %v241 = vpop.permute.xlu0 %240
    %242 = vrot.lane.b32.xlu0 %v33, 1
    %v243 = vpop.permute.xlu0 %242
    %244 = vrot.lane.b32.xlu0 %v34, 1
    %v245 = vpop.permute.xlu0 %244
    %246 = vrot.lane.b32.xlu0 %v35, 1
    %v247 = vpop.permute.xlu0 %246
    %248 = vrot.lane.b32.xlu0 %v36, 1
    %v249 = vpop.permute.xlu0 %248
    %250 = vrot.lane.b32.xlu0 %v37, 1
    %v251 = vpop.permute.xlu0 %250
    %252 = vrot.lane.b32.xlu0 %v38, 1
    %v253 = vpop.permute.xlu0 %252
    %254 = vrot.lane.b32.xlu0 %v39, 1
    %v255 = vpop.permute.xlu0 %254
    %256 = vrot.lane.b32.xlu0 %v40, 1
    %v257 = vpop.permute.xlu0 %256
    %258 = vrot.lane.b32.xlu0 %v41, 1
    %v259 = vpop.permute.xlu0 %258
    %260 = vrot.lane.b32.xlu0 %v42, 1
    %v261 = vpop.permute.xlu0 %260
    %262 = vrot.lane.b32.xlu0 %v43, 1
    %v263 = vpop.permute.xlu0 %262
    %264 = vrot.lane.b32.xlu0 %v44, 1
    %v265 = vpop.permute.xlu0 %264
    %266 = vrot.lane.b32.xlu0 %v45, 1
    %v267 = vpop.permute.xlu0 %266
    %268 = vrot.lane.b32.xlu0 %v46, 1
    %v269 = vpop.permute.xlu0 %268
    %270 = vrot.lane.b32.xlu0 %v47, 1
    %v271 = vpop.permute.xlu0 %270
    %v288 = vsub.f32 %v32, %v241
    %v289 = vsub.f32 %v33, %v243
    %v290 = vsub.f32 %v34, %v245
    %v291 = vsub.f32 %v35, %v247
    %v292 = vsub.f32 %v36, %v249
    %v293 = vsub.f32 %v37, %v251
    %v294 = vsub.f32 %v38, %v253
    %v295 = vsub.f32 %v39, %v255
    %v296 = vsub.f32 %v40, %v257
    %v297 = vsub.f32 %v41, %v259
    %v298 = vsub.f32 %v42, %v261
    %v299 = vsub.f32 %v43, %v263
    %v300 = vsub.f32 %v44, %v265
    %v301 = vsub.f32 %v45, %v267
    %v302 = vsub.f32 %v46, %v269
    %v303 = vsub.f32 %v47, %v271
    %v304 = vld [vmem:[#allocation3] sm:$0xff]
    %v305 = vmul.f32 %v288, %v288
    %v306 = vmul.f32 %v289, %v289
    %v307 = vmul.f32 %v290, %v290
    %v308 = vmul.f32 %v291, %v291
    %v309 = vmul.f32 %v292, %v292
    %v310 = vmul.f32 %v293, %v293
    %v311 = vmul.f32 %v294, %v294
    %v312 = vmul.f32 %v295, %v295
    %v313 = vmul.f32 %v296, %v296
    %v314 = vmul.f32 %v297, %v297
    %v315 = vmul.f32 %v298, %v298
    %v316 = vmul.f32 %v299, %v299
    %v317 = vmul.f32 %v300, %v300
    %v318 = vmul.f32 %v301, %v301
    %v319 = vmul.f32 %v302, %v302
    %v320 = vmul.f32 %v303, %v303
    %337 = vrot.lane.b32.xlu0 %v305, 127
    %v338 = vpop.permute.xlu0 %337
    %339 = vrot.lane.b32.xlu0 %v306, 127
    %v340 = vpop.permute.xlu0 %339
    %341 = vrot.lane.b32.xlu0 %v307, 127
    %v342 = vpop.permute.xlu0 %341
    %343 = vrot.lane.b32.xlu0 %v308, 127
    %v344 = vpop.permute.xlu0 %343
    %345 = vrot.lane.b32.xlu0 %v309, 127
    %v346 = vpop.permute.xlu0 %345
    %347 = vrot.lane.b32.xlu0 %v310, 127
    %v348 = vpop.permute.xlu0 %347
    %349 = vrot.lane.b32.xlu0 %v311, 127
    %v350 = vpop.permute.xlu0 %349
    %351 = vrot.lane.b32.xlu0 %v312, 127
    %v352 = vpop.permute.xlu0 %351
    %353 = vrot.lane.b32.xlu0 %v313, 127
    %v354 = vpop.permute.xlu0 %353
    %355 = vrot.lane.b32.xlu0 %v314, 127
    %v356 = vpop.permute.xlu0 %355
    %357 = vrot.lane.b32.xlu0 %v315, 127
    %v358 = vpop.permute.xlu0 %357
    %359 = vrot.lane.b32.xlu0 %v316, 127
    %v360 = vpop.permute.xlu0 %359
    %361 = vrot.lane.b32.xlu0 %v317, 127
    %v362 = vpop.permute.xlu0 %361
    %363 = vrot.lane.b32.xlu0 %v318, 127
    %v364 = vpop.permute.xlu0 %363
    %365 = vrot.lane.b32.xlu0 %v319, 127
    %v366 = vpop.permute.xlu0 %365
    %367 = vrot.lane.b32.xlu0 %v320, 127
    %v368 = vpop.permute.xlu0 %367
    %vm385 = vcmask 121856
    %v386 = vsel %vm385, %v338, 0.0
    %v387 = vsel %vm385, %v340, 0.0
    %v388 = vadd.f32 %v386, %v387
    %v389 = vsel %vm385, %v342, 0.0
    %v390 = vadd.f32 %v388, %v389
    %v391 = vsel %vm385, %v344, 0.0
    %v392 = vadd.f32 %v390, %v391
    %v393 = vsel %vm385, %v346, 0.0
    %v394 = vadd.f32 %v392, %v393
    %v395 = vsel %vm385, %v348, 0.0
    %v396 = vadd.f32 %v394, %v395
    %v397 = vsel %vm385, %v350, 0.0
    %v398 = vadd.f32 %v396, %v397
    %v399 = vsel %vm385, %v352, 0.0
    %v400 = vadd.f32 %v398, %v399
    %v401 = vsel %vm385, %v354, 0.0
    %v402 = vadd.f32 %v400, %v401
    %v403 = vsel %vm385, %v356, 0.0
    %v404 = vadd.f32 %v402, %v403
    %v405 = vsel %vm385, %v358, 0.0
    %v406 = vadd.f32 %v404, %v405
    %v407 = vsel %vm385, %v360, 0.0
    %v408 = vadd.f32 %v406, %v407
    %v409 = vsel %vm385, %v362, 0.0
    %v410 = vadd.f32 %v408, %v409
    %v411 = vsel %vm385, %v364, 0.0
    %v412 = vadd.f32 %v410, %v411
    %v413 = vsel %vm385, %v366, 0.0
    %v414 = vadd.f32 %v412, %v413
    %v415 = vsel %vm385, %v368, 0.0
    %v416 = vadd.f32 %v414, %v415
    %417 = vadd.xlane.f32.xlu0 %v416
    %v418 = vpop.xlane.xlu0 %417
    %v419 = vrot.slane %v418, 4
    %v420 = vadd.f32 %v418, %v419
    %v421 = vrot.slane %v420, 2
    %v422 = vadd.f32 %v420, %v421
    %v423 = vrot.slane %v422, 1
    %v424 = vadd.f32 %v422, %v423
    %s425 = vtos %v424
    %v426 = vstv %s425
    %v427 = vadd.f32 %v304, %v426
    %428 = vst [vmem:[#allocation3] sm:$0xff] %v427
    // Predicated region
    $region14: #{tpu_custom_call.1} parent=1 // pred_check
      %p429 = pneg %p26
    $region15: #{tpu_custom_call.1} parent=1 // pred_check_branch
      %431 = sbr.rel (%p429) target = $region17
    $region16: #{tpu_custom_call.1} parent=1 // pred_region
      %v432 = vld [vmem:[#allocation2] sm:$0xff]
      %433 = vst [vmem:[#allocation8] sm:$0xff] %v432
      %v434 = vld [vmem:[#allocation3] sm:$0xff]
      %435 = vst [vmem:[#allocation9] sm:$0xff] %v434
    $region17: #{tpu_custom_call.1} parent=1 // pred_fallthru
      _
    // Predicated region
    $region18: #{tpu_custom_call.1} parent=1 // pred_check
      _
    $region19: #{tpu_custom_call.1} parent=1 // pred_check_branch
      %437 = sbr.rel (0) target = $region21
    $region20: #{tpu_custom_call.1} parent=1 // pred_region
      %s439 = ssub.s32 128, 128
      %440 = vsyncadd [#allocation7], %s439
      %s442 = sshll.u32 [#allocation8], 4
      %s443 = int_to_ptr.vmem [resolvable:$true] %s442
      %445 = dma.vmem_to_hbm [thread:$0]  %s443, 128, %s1, [#allocation7]
    $region21: #{tpu_custom_call.1} parent=1 // pred_fallthru
      _
    // Predicated region
    $region22: #{tpu_custom_call.1} parent=1 // pred_check
      _
    $region23: #{tpu_custom_call.1} parent=1 // pred_check_branch
      %447 = sbr.rel (0) target = $region25
    $region24: #{tpu_custom_call.1} parent=1 // pred_region
      %s449 = ssub.s32 128, 128
      %450 = vsyncadd [#allocation10], %s449
      %s452 = sshll.u32 [#allocation9], 4
      %s453 = int_to_ptr.vmem [resolvable:$true] %s452
      %455 = dma.vmem_to_hbm [thread:$0]  %s453, 128, %s2, [#allocation10]
    $region25: #{tpu_custom_call.1} parent=1 // pred_fallthru
      _
    // Predicated region
    $region26: #{tpu_custom_call.1} parent=1 // pred_check
      _
    $region27: #{tpu_custom_call.1} parent=1 // pred_check_branch
      %457 = sbr.rel (0) target = $region29
    $region28: #{tpu_custom_call.1} parent=1 // pred_region
      %458 = dma.done [#allocation7], 128
    $region29: #{tpu_custom_call.1} parent=1 // pred_fallthru
      _
    // Predicated region
    $region30: #{tpu_custom_call.1} parent=1 // pred_check
      _
    $region31: #{tpu_custom_call.1} parent=1 // pred_check_branch
      %460 = sbr.rel (0) target = $region33
    $region32: #{tpu_custom_call.1} parent=1 // pred_region
      %461 = dma.done [#allocation10], 128
    $region33: #{tpu_custom_call.1} parent=1 // pred_fallthru
      _
    %462 = vsyncpa [#allocation6], 1
    %463 = vsyncpa [#allocation7], 1
    %464 = vsyncpa [#allocation10], 1

</llo_original>
